<compile_context>
chip_gen: v5e
topology: v5e:2x2
jax: 0.10.0
libtpu: 0.0.40
codegen_flags: <defaults>
</compile_context>

<pallas_src>
import math
import functools

import jax
import jax.numpy as jnp
from jax.experimental import pallas as pl
from jax.experimental.pallas import tpu as pltpu

DROPOUT_P = 0.1
_TARGET_BLOCK_BYTES = 2 * 1024 * 1024   # ~2 MiB x-tile -> near HBM roofline
_VMEM_LIMIT_BYTES = 32 * 1024 * 1024    # safe headroom on v5e/v6e/v7x


# ----------------------------------------------------------------------------
# Parameter / buffer setup (plain JAX glue, deterministic)
# ----------------------------------------------------------------------------
def make_positional_encoding(max_len: int, d_model: int) -> jnp.ndarray:
    """Returns pe table of shape (max_len, d_model), float32."""
    position = jnp.arange(max_len, dtype=jnp.float32)[:, None]            # (L, 1)
    div_term = jnp.exp(
        jnp.arange(0, d_model, 2, dtype=jnp.float32) * (-math.log(10000.0) / d_model)
    )                                                                      # (D/2,)
    pe = jnp.zeros((max_len, d_model), dtype=jnp.float32)
    pe = pe.at[:, 0::2].set(jnp.sin(position * div_term))
    pe = pe.at[:, 1::2].set(jnp.cos(position * div_term))
    return pe


def _choose_block_rows(S: int, B: int, D: int, itemsize: int) -> int:
    """Rows per sequence tile so one x tile is ~_TARGET_BLOCK_BYTES."""
    bytes_per_row = max(1, B * D * itemsize)
    rows = max(1, _TARGET_BLOCK_BYTES // bytes_per_row)
    if rows >= S:
        return S
    rows = max(8, (rows // 8) * 8)   # keep tidy sublane-aligned row counts
    return min(rows, S)


# ----------------------------------------------------------------------------
# Pallas kernels
# ----------------------------------------------------------------------------
def _pe_add_kernel(x_ref, pe_ref, o_ref):
    # x_ref: (tS, B, D); pe_ref: (tS, 1, D) -> cheap sublane broadcast over batch.
    o_ref[...] = (x_ref[...] + pe_ref[...]).astype(o_ref.dtype)


def _uniform_bits(shape, row_offset, seed_u32):
    """Stateless per-element uniform uint32 via a splitmix32-style mixer.

    Uses the GLOBAL (sequence-row, batch, feature) index so different grid
    tiles automatically get independent dropout masks.
    """
    tS, B, D = shape
    s = jax.lax.broadcasted_iota(jnp.int32, shape, 0) + row_offset
    b = jax.lax.broadcasted_iota(jnp.int32, shape, 1)
    d = jax.lax.broadcasted_iota(jnp.int32, shape, 2)
    flat = ((s * B + b) * D + d).astype(jnp.uint32)
    key = seed_u32 * jnp.uint32(0x9E3779B9) + jnp.uint32(0x7F4A7C15)
    h = (flat * jnp.uint32(0x85EBCA6B)) ^ key
    h = (h ^ (h >> 16)) * jnp.uint32(0x7FEB352D)
    h = (h ^ (h >> 15)) * jnp.uint32(0x846CA68B)
    return h ^ (h >> 16)


def _pe_add_dropout_kernel(seed_ref, x_ref, pe_ref, o_ref, *, p):
    # Training-mode forward: (x + pe) then inverted dropout with keep prob 1-p.
    tS, B, D = x_ref.shape
    y = (x_ref[...] + pe_ref[...]).astype(jnp.float32)

    row_offset = pl.program_id(0) * tS                       # global seq offset
    bits = _uniform_bits((tS, B, D), row_offset, seed_ref[0].astype(jnp.uint32))
    # Top 24 bits -> uniform int in [0, 2^24); drop iff below round(p * 2^24).
    r24 = (bits >> 8).astype(jnp.int32)
    thresh = jnp.int32(int(round(p * float(1 << 24))))
    keep = r24 >= thresh

    scale = jnp.float32(1.0 / (1.0 - p))
    o_ref[...] = jnp.where(keep, y * scale, jnp.float32(0.0)).astype(o_ref.dtype)


# ----------------------------------------------------------------------------
# Wrappers
# ----------------------------------------------------------------------------
@functools.partial(jax.jit, static_argnames=("block_rows",))
def positional_encoding_eval(x, pe_table, block_rows=None):
    """Eval-mode forward (dropout is identity). x: (S, B, D)."""
    S, B, D = x.shape
    tS = block_rows if block_rows is not None else _choose_block_rows(
        S, B, D, x.dtype.itemsize)
    pe_slice = pe_table[:S].reshape(S, 1, D).astype(x.dtype)   # (S, 1, D)
    return pl.pallas_call(
        _pe_add_kernel,
        out_shape=jax.ShapeDtypeStruct((S, B, D), x.dtype),
        grid=(pl.cdiv(S, tS),),
        in_specs=[
            pl.BlockSpec((tS, B, D), lambda i: (i, 0, 0)),
            pl.BlockSpec((tS, 1, D), lambda i: (i, 0, 0)),
        ],
        out_specs=pl.BlockSpec((tS, B, D), lambda i: (i, 0, 0)),
        compiler_params=pltpu.CompilerParams(
            dimension_semantics=("parallel",),
            vmem_limit_bytes=_VMEM_LIMIT_BYTES,
        ),
    )(x, pe_slice)


@functools.partial(jax.jit, static_argnames=("p", "block_rows"))
def positional_encoding_train(x, pe_table, seed, p=DROPOUT_P, block_rows=None):
    """Train-mode forward (applies dropout in-kernel). x: (S, B, D)."""
    S, B, D = x.shape
    tS = block_rows if block_rows is not None else _choose_block_rows(
        S, B, D, x.dtype.itemsize)
    pe_slice = pe_table[:S].reshape(S, 1, D).astype(x.dtype)   # (S, 1, D)
    seed_arr = jnp.reshape(jnp.asarray(seed, dtype=jnp.int32), (1,))
    return pl.pallas_call(
        functools.partial(_pe_add_dropout_kernel, p=p),
        out_shape=jax.ShapeDtypeStruct((S, B, D), x.dtype),
        grid_spec=pltpu.PrefetchScalarGridSpec(
            num_scalar_prefetch=1,   # seed lands in SMEM, passed first to kernel
            grid=(pl.cdiv(S, tS),),
            in_specs=[
                pl.BlockSpec((tS, B, D), lambda i, seed_ref: (i, 0, 0)),
                pl.BlockSpec((tS, 1, D), lambda i, seed_ref: (i, 0, 0)),
            ],
            out_specs=pl.BlockSpec((tS, B, D), lambda i, seed_ref: (i, 0, 0)),
        ),
        compiler_params=pltpu.CompilerParams(
            dimension_semantics=("parallel",),
            vmem_limit_bytes=_VMEM_LIMIT_BYTES,
        ),
    )(seed_arr, x, pe_slice)


# ----------------------------------------------------------------------------
# Main
# ----------------------------------------------------------------------------
if __name__ == "__main__":
    d_model, max_len = 32, 64
    pe_table = make_positional_encoding(max_len, d_model)
    scale = jnp.float32(1.0 / (1.0 - DROPOUT_P))

    # --- Case 1: small single-tile shape -------------------------------------
    seq_len, batch = 8, 2
    key = jax.random.PRNGKey(0)
    x = jax.random.normal(key, (seq_len, batch, d_model), dtype=jnp.float32)
    ref = x + pe_table[:seq_len][:, None, :]

    out_eval = jax.block_until_ready(positional_encoding_eval(x, pe_table))
    assert out_eval.shape == (seq_len, batch, d_model)
    assert jnp.allclose(out_eval, ref, atol=1e-6, rtol=1e-6)

    out_train = jax.block_until_ready(positional_encoding_train(x, pe_table, 42))
    assert out_train.shape == (seq_len, batch, d_model)
    assert bool(jnp.all(jnp.isfinite(out_train)))
    kept = out_train != 0.0
    # kept elements equal ref * 1/(1-p); dropped elements are exactly zero
    assert jnp.allclose(
        jnp.where(kept, out_train, 0.0),
        jnp.where(kept, ref * scale, 0.0),
        atol=1e-5, rtol=1e-5,
    )
    n_drop = int(jnp.sum(~kept))
    assert 0 < n_drop < 0.5 * out_train.size

    # --- Case 2: multi-tile grid (3 sequence tiles of 8 rows) -----------------
    seq_len2, batch2 = 24, 2
    x2 = jax.random.normal(jax.random.PRNGKey(1), (seq_len2, batch2, d_model),
                           dtype=jnp.float32)
    ref2 = x2 + pe_table[:seq_len2][:, None, :]

    out_eval2 = jax.block_until_ready(
        positional_encoding_eval(x2, pe_table, block_rows=8))
    assert jnp.allclose(out_eval2, ref2, atol=1e-6, rtol=1e-6)

    out_train2 = jax.block_until_ready(
        positional_encoding_train(x2, pe_table, 7, block_rows=8))
    kept2 = out_train2 != 0.0
    assert jnp.allclose(
        jnp.where(kept2, out_train2, 0.0),
        jnp.where(kept2, ref2 * scale, 0.0),
        atol=1e-5, rtol=1e-5,
    )

    print("KERNEL_OK")
</pallas_src>

<mosaic_0001>
module attributes {stable_mosaic.version = 11 : i64} {
  func.func @_pe_add_kernel(%arg0: i32, %arg1: memref<8x2x32xf32, #tpu.memory_space<vmem>>, %arg2: memref<8x1x32xf32, #tpu.memory_space<vmem>>, %arg3: memref<8x2x32xf32, #tpu.memory_space<vmem>>) attributes {dimension_semantics = [#tpu.dimension_semantics<parallel>], iteration_bounds = array<i64: 1>, scalar_prefetch = 0 : i64, scratch_operands = 0 : i64, tpu.core_type = #tpu.core_type<tc>, window_params = [{transform_indices = @transform_0, window_bounds = array<i64: 8, 2, 32>}, {transform_indices = @transform_1, window_bounds = array<i64: 8, 1, 32>}, {transform_indices = @transform_2, window_bounds = array<i64: 8, 2, 32>}]} {
    %c0 = arith.constant 0 : index
    %c0_0 = arith.constant 0 : index
    %c0_1 = arith.constant 0 : index
    %0 = vector.load %arg1[%c0, %c0_0, %c0_1] : memref<8x2x32xf32, #tpu.memory_space<vmem>>, vector<8x2x32xf32>
    %c0_2 = arith.constant 0 : index
    %c0_3 = arith.constant 0 : index
    %c0_4 = arith.constant 0 : index
    %1 = vector.load %arg2[%c0_2, %c0_3, %c0_4] : memref<8x1x32xf32, #tpu.memory_space<vmem>>, vector<8x1x32xf32>
    %2 = vector.broadcast %1 : vector<8x1x32xf32> to vector<8x2x32xf32>
    %3 = arith.addf %0, %2 : vector<8x2x32xf32>
    %c0_5 = arith.constant 0 : index
    %c0_6 = arith.constant 0 : index
    %c0_7 = arith.constant 0 : index
    %4 = vector.load %arg3[%c0_5, %c0_6, %c0_7] : memref<8x2x32xf32, #tpu.memory_space<vmem>>, vector<8x2x32xf32>
    tpu.vector_store %arg3[%c0_5, %c0_6, %c0_7], %3 {strides = array<i32>} : memref<8x2x32xf32, #tpu.memory_space<vmem>>, vector<8x2x32xf32>,
    return
  }
  func.func @transform_0(%arg0: i32) -> (i32, i32, i32) {
    %c0_i32 = arith.constant 0 : i32
    %c0_i32_0 = arith.constant 0 : i32
    %c0_i32_1 = arith.constant 0 : i32
    return %arg0, %c0_i32, %c0_i32_0 : i32, i32, i32
  }
  func.func @transform_1(%arg0: i32) -> (i32, i32, i32) {
    %c0_i32 = arith.constant 0 : i32
    %c0_i32_0 = arith.constant 0 : i32
    %c0_i32_1 = arith.constant 0 : i32
    return %arg0, %c0_i32, %c0_i32_0 : i32, i32, i32
  }
  func.func @transform_2(%arg0: i32) -> (i32, i32, i32) {
    %c0_i32 = arith.constant 0 : i32
    %c0_i32_0 = arith.constant 0 : i32
    %c0_i32_1 = arith.constant 0 : i32
    return %arg0, %c0_i32, %c0_i32_0 : i32, i32, i32
  }
}

</mosaic_0001>

<llo_original>
// kernel: positional_encoding_eval.1
$region0: #{positional_encoding_eval.1}
  #allocation0 [shape = 'u32[]', space=smem, size = 0x4, offset = 0x4, fixed_abs, tag = 'smem constant byte address 0x4 - core index']
  #allocation1 [shape = 'u32[72,128]{1,0:T(1,128)}', space=vmem, size = 0x9000, scoped, tag = 'internal scratch']
  %s0 = inlined_call_operand.vmem [shape: f32[8,2,32], index: 0, kind: input, shape index: {}]
  %s1 = inlined_call_operand.vmem [shape: f32[8,1,32], index: 1, kind: input, shape index: {}]
  %s2 = inlined_call_operand.hbm [shape: f32[8,2,32], index: 2, kind: output, shape index: {}]
  %s3 = sld [smem:[#allocation0]]
  $region18: #{positional_encoding_eval.1} parent=0
    _
  %s5 = ssub.s32 1, %s3
  %s6 = scalar_select 0, %s5, %s3
  $region1: #{positional_encoding_eval.1} parent=0
    #allocation2 [shape = 'u8[8192]{0}', space=vmem, size = 0x2000, scoped, tag = 'output window, operand 0, single buffered']
    #allocation3 [shape = 's32[1]{0}', space=sflag, size = 0x4, scoped, tag = 'scoped memory for positional_encoding_eval.1']
    %7 = vsyncpa [#allocation3], 0
    // Predicated region
    $region2: #{positional_encoding_eval.1} parent=1 // pred_check
      _
    $region3: #{positional_encoding_eval.1} parent=1 // pred_check_branch
      %9 = sbr.rel (0) target = $region5
    $region4: #{positional_encoding_eval.1} parent=1 // pred_region
      _
    $region5: #{positional_encoding_eval.1} parent=1 // pred_fallthru
      _
    // Predicated region
    $region6: #{positional_encoding_eval.1} parent=1 // pred_check
      _
    $region7: #{positional_encoding_eval.1} parent=1 // pred_check_branch
      %11 = sbr.rel (0) target = $region9
    $region8: #{positional_encoding_eval.1} parent=1 // pred_region
      _
    $region9: #{positional_encoding_eval.1} parent=1 // pred_fallthru
      _
    %v12 = vld [vmem:[%s0] sm:$0x3]
    %v13 = vld [vmem:[%s0 + $0x2] sm:$0x3]
    %v14 = vld [vmem:[%s0 + $0x4] sm:$0x3]
    %v15 = vld [vmem:[%s0 + $0x6] sm:$0x3]
    %v16 = vld [vmem:[%s0 + $0x8] sm:$0x3]
    %v17 = vld [vmem:[%s0 + $0xa] sm:$0x3]
    %v18 = vld [vmem:[%s0 + $0xc] sm:$0x3]
    %v19 = vld [vmem:[%s0 + $0xe] sm:$0x3]
    %v20 = vld [vmem:[%s1] sm:$0x1]
    %v21 = vld [vmem:[%s1 + $0x1] sm:$0x1]
    %v22 = vld [vmem:[%s1 + $0x2] sm:$0x1]
    %v23 = vld [vmem:[%s1 + $0x3] sm:$0x1]
    %v24 = vld [vmem:[%s1 + $0x4] sm:$0x1]
    %v25 = vld [vmem:[%s1 + $0x5] sm:$0x1]
    %v26 = vld [vmem:[%s1 + $0x6] sm:$0x1]
    %v27 = vld [vmem:[%s1 + $0x7] sm:$0x1]
    %v36 = vperm.slane %v20, 0
    %v37 = vperm.slane %v21, 0
    %v38 = vperm.slane %v22, 0
    %v39 = vperm.slane %v23, 0
    %v40 = vperm.slane %v24, 0
    %v41 = vperm.slane %v25, 0
    %v42 = vperm.slane %v26, 0
    %v43 = vperm.slane %v27, 0
    %v52 = vadd.f32 %v12, %v36
    %v53 = vadd.f32 %v13, %v37
    %v54 = vadd.f32 %v14, %v38
    %v55 = vadd.f32 %v15, %v39
    %v56 = vadd.f32 %v16, %v40
    %v57 = vadd.f32 %v17, %v41
    %v58 = vadd.f32 %v18, %v42
    %v59 = vadd.f32 %v19, %v43
    %vm60 = vcmask 254976
    %61 = vst.msk [vmem:[#allocation2] sm:$0x3] %vm60, %v52
    %62 = vst.msk [vmem:[#allocation2 + $0x2] sm:$0x3] %vm60, %v53
    %63 = vst.msk [vmem:[#allocation2 + $0x4] sm:$0x3] %vm60, %v54
    %64 = vst.msk [vmem:[#allocation2 + $0x6] sm:$0x3] %vm60, %v55
    %65 = vst.msk [vmem:[#allocation2 + $0x8] sm:$0x3] %vm60, %v56
    %66 = vst.msk [vmem:[#allocation2 + $0xa] sm:$0x3] %vm60, %v57
    %67 = vst.msk [vmem:[#allocation2 + $0xc] sm:$0x3] %vm60, %v58
    %68 = vst.msk [vmem:[#allocation2 + $0xe] sm:$0x3] %vm60, %v59
    // Predicated region
    $region10: #{positional_encoding_eval.1} parent=1 // pred_check
      _
    $region11: #{positional_encoding_eval.1} parent=1 // pred_check_branch
      %70 = sbr.rel (0) target = $region13
    $region12: #{positional_encoding_eval.1} parent=1 // pred_region
      %72 = vsyncadd [#allocation3], 0
      %s73 = sshll.u32 [#allocation2], 4
      %s74 = int_to_ptr.vmem [resolvable:$true] %s73
      %s75 = sshll.u32 %s2, 4
      %s76 = int_to_ptr.hbm [resolvable:$true] %s75
      %81 = dma.vmem_to_hbm [thread:$0]  %s74, 256, %s76, [#allocation3], 32, 32, 2
    $region13: #{positional_encoding_eval.1} parent=1 // pred_fallthru
      _
    // Predicated region
    $region14: #{positional_encoding_eval.1} parent=1 // pred_check
      _
    $region15: #{positional_encoding_eval.1} parent=1 // pred_check_branch
      %83 = sbr.rel (0) target = $region17
    $region16: #{positional_encoding_eval.1} parent=1 // pred_region
      %85 = dma.done [#allocation3], 256
    $region17: #{positional_encoding_eval.1} parent=1 // pred_fallthru
      _
    %86 = vsyncpa [#allocation3], 1

</llo_original>
